<compile_context>
chip_gen: v6e
topology: v6e:2x2x1
jax: 0.10.0
libtpu: 0.0.40
codegen_flags: <defaults>
</compile_context>

<pallas_src>
import functools

import jax
import jax.numpy as jnp
from jax.experimental import pallas as pl
from jax.experimental.pallas import tpu as pltpu

N = 256       # samples per loss evaluation; multiple of 128 for lane alignment
F_MSE = 1.0   # weight factor for MSE (module __init__ arg, set deterministically)
F_MI = 0.5    # weight factor for MI  (module __init__ arg, set deterministically)

_EPS_STD = 1e-8
_EPS_LOG = 1e-12


def _default_kde_dtype():
    """bf16 KDE matrices on chips with bf16 VPU/EUP (v6e/v7x), else f32 (v5e)."""
    try:
        kind = jax.devices()[0].device_kind.lower()
    except Exception:
        return jnp.float32
    return jnp.bfloat16 if ("v6" in kind or "v7" in kind) else jnp.float32


def _make_mi_loss_kernel(n, f_mse, f_mi, kde_dtype):
    nf = float(n)
    inv_nf = 1.0 / nf
    inv_nm1 = 1.0 / (nf - 1.0)
    h = 1.06 * nf ** (-0.2)            # Silverman bandwidth, sigma = 1 (standardized)
    neg_inv_2h2 = -1.0 / (2.0 * h * h)

    def kernel(yp_ref, yt_ref, total_ref, loss1_ref, mi_ref):
        yp = yp_ref[0]                 # (1, N) f32
        yt = yt_ref[0]                 # (1, N) f32

        # ---------------- loss1 = MSE(y_pred, y_), reduction='mean' ------------
        d = yp - yt
        loss1 = jnp.sum(d * d, keepdims=True) * inv_nf            # (1, 1)

        # ---------------- residual x_ = y_ - y_pred ----------------------------
        x = yt - yp

        # ---------- standardize (torch .mean()/.std(), unbiased ddof=1) --------
        def standardize(v):
            m = jnp.sum(v, keepdims=True) * inv_nf                # (1, 1)
            c = v - m
            var = jnp.sum(c * c, keepdims=True) * inv_nm1         # (1, 1)
            inv_s = pl.reciprocal(jnp.sqrt(var) + _EPS_STD, approx=True)
            return c * inv_s                                      # (1, N)

        a = standardize(yp)
        b = standardize(x)

        # ---------------- Gaussian-KDE mutual information ----------------------
        # Row-broadcast matrices R[i, j] = v[j]; the column view comes from a
        # full (N, N) transpose in-kernel (XLU) -- no padded (N,1) inputs.
        a_row = jnp.broadcast_to(a, (n, n))
        b_row = jnp.broadcast_to(b, (n, n))
        da = (a_row.T - a_row).astype(kde_dtype)                  # a[i] - a[j]
        db = (b_row.T - b_row).astype(kde_dtype)
        kx = jnp.exp((da * da) * neg_inv_2h2)                     # (N, N)
        ky = jnp.exp((db * db) * neg_inv_2h2)                     # (N, N)

        # kx, ky, kx*ky are symmetric -> column sums == row sums; reduce along
        # axis=0 (cheap sublane/VPU path), accumulate in f32, result (1, N).
        px = jnp.sum(kx, axis=0, keepdims=True, dtype=jnp.float32) * inv_nf
        py = jnp.sum(ky, axis=0, keepdims=True, dtype=jnp.float32) * inv_nf
        pxy = jnp.sum(kx * ky, axis=0, keepdims=True, dtype=jnp.float32) * inv_nf

        log_ratio = (jnp.log(pxy + _EPS_LOG)
                     - jnp.log(px + _EPS_LOG)
                     - jnp.log(py + _EPS_LOG))                    # (1, N)
        mi = jnp.sum(log_ratio, keepdims=True) * inv_nf           # (1, 1)

        total = loss1 * f_mse + jnp.abs(mi) * f_mi                # (1, 1)

        total_ref[...] = total.reshape(1, 1, 1)
        loss1_ref[...] = loss1.reshape(1, 1, 1)
        mi_ref[...] = mi.reshape(1, 1, 1)

    return kernel


@functools.partial(jax.jit, static_argnums=(2, 3, 4))
def _mi_loss_batched(yp, yt, f_mse, f_mi, kde_dtype):
    bsz, n = yp.shape
    kernel = _make_mi_loss_kernel(n, f_mse, f_mi, kde_dtype)
    scalar = jax.ShapeDtypeStruct((bsz, 1, 1), jnp.float32)
    total, loss1, mi = pl.pallas_call(
        kernel,
        out_shape=(scalar, scalar, scalar),
        grid=(bsz,),
        in_specs=[pl.BlockSpec((1, 1, n), lambda b: (b, 0, 0)),
                  pl.BlockSpec((1, 1, n), lambda b: (b, 0, 0))],
        out_specs=(pl.BlockSpec((1, 1, 1), lambda b: (b, 0, 0)),
                   pl.BlockSpec((1, 1, 1), lambda b: (b, 0, 0)),
                   pl.BlockSpec((1, 1, 1), lambda b: (b, 0, 0))),
        compiler_params=pltpu.CompilerParams(
            dimension_semantics=("parallel",)),
    )(yp.reshape(bsz, 1, n), yt.reshape(bsz, 1, n))
    return total.reshape(bsz), loss1.reshape(bsz), mi.reshape(bsz)


def mi_loss(y_pred, y_, f_mse=F_MSE, f_mi=F_MI, kde_dtype=None):
    """Pallas implementation of MI_Loss.forward; returns (loss, loss1, loss2).

    y_pred / y_ may be 1-D (N,) for a single loss evaluation (module semantics)
    or 2-D (B, N) for B independent evaluations batched into one kernel launch.
    f_mse / f_mi must be static Python floats (module __init__ arguments).
    """
    if kde_dtype is None:
        kde_dtype = _default_kde_dtype()
    yp = jnp.asarray(y_pred, jnp.float32)
    yt = jnp.asarray(y_, jnp.float32)
    single = yp.ndim == 1
    if single:
        yp = yp[None, :]
        yt = yt[None, :]
    if yp.shape[-1] % 128 != 0:
        raise ValueError("sample length must be a multiple of 128")
    total, loss1, loss2 = _mi_loss_batched(yp, yt, float(f_mse), float(f_mi),
                                           kde_dtype)
    if single:
        return total[0], loss1[0], loss2[0]
    return total, loss1, loss2


if __name__ == "__main__":
    key = jax.random.PRNGKey(0)
    k1, k2 = jax.random.split(key)
    y_true = jax.random.normal(k1, (N,), dtype=jnp.float32)                 # target
    y_pred = y_true + 0.3 * jax.random.normal(k2, (N,), dtype=jnp.float32)  # prediction

    # Single evaluation (module-equivalent call).
    total, loss1, loss2 = mi_loss(y_pred, y_true)
    jax.block_until_ready((total, loss1, loss2))

    # Batched evaluation: B independent losses in one pallas_call
    # (grid=(B,), "parallel" -> megacore sharding on v7x, overhead amortization).
    B = 4
    yp_b = jnp.stack([y_pred * (1.0 + 0.05 * i) for i in range(B)])
    yt_b = jnp.broadcast_to(y_true, (B, N))
    tot_b, l1_b, l2_b = mi_loss(yp_b, yt_b)
    jax.block_until_ready((tot_b, l1_b, l2_b))

    print("KERNEL_OK")
</pallas_src>

<mosaic_0001>
module attributes {stable_mosaic.version = 11 : i64} {
  func.func @kernel(%arg0: i32, %arg1: memref<1x1x256xf32, #tpu.memory_space<vmem>>, %arg2: memref<1x1x256xf32, #tpu.memory_space<vmem>>, %arg3: memref<1x1x1xf32, #tpu.memory_space<vmem>>, %arg4: memref<1x1x1xf32, #tpu.memory_space<vmem>>, %arg5: memref<1x1x1xf32, #tpu.memory_space<vmem>>) attributes {dimension_semantics = [#tpu.dimension_semantics<parallel>], iteration_bounds = array<i64: 1>, scalar_prefetch = 0 : i64, scratch_operands = 0 : i64, tpu.core_type = #tpu.core_type<tc>, window_params = [{transform_indices = @transform_0, window_bounds = array<i64: 1, 1, 256>}, {transform_indices = @transform_1, window_bounds = array<i64: 1, 1, 256>}, {transform_indices = @transform_2, window_bounds = array<i64: 1, 1, 1>}, {transform_indices = @transform_3, window_bounds = array<i64: 1, 1, 1>}, {transform_indices = @transform_4, window_bounds = array<i64: 1, 1, 1>}]} {
    %c0 = arith.constant 0 : index
    %c0_0 = arith.constant 0 : index
    %c0_1 = arith.constant 0 : index
    %0 = vector.load %arg1[%c0, %c0_0, %c0_1] : memref<1x1x256xf32, #tpu.memory_space<vmem>>, vector<1x1x256xf32>
    %1 = vector.shape_cast %0 : vector<1x1x256xf32> to vector<1x256xf32>
    %c0_2 = arith.constant 0 : index
    %c0_3 = arith.constant 0 : index
    %c0_4 = arith.constant 0 : index
    %2 = vector.load %arg2[%c0_2, %c0_3, %c0_4] : memref<1x1x256xf32, #tpu.memory_space<vmem>>, vector<1x1x256xf32>
    %3 = vector.shape_cast %2 : vector<1x1x256xf32> to vector<1x256xf32>
    %4 = arith.subf %1, %3 : vector<1x256xf32>
    %5 = arith.mulf %4, %4 : vector<1x256xf32>
    %6 = vector.shape_cast %5 : vector<1x256xf32> to vector<1x1x256xf32>
    %cst = arith.constant dense<0.000000e+00> : vector<1xf32>
    %7 = vector.multi_reduction <add>, %6, %cst [1, 2] : vector<1x1x256xf32> to vector<1xf32>
    %8 = vector.shape_cast %7 : vector<1xf32> to vector<1x1x1xf32>
    %9 = vector.extract %8[0, 0, 0] : f32 from vector<1x1x1xf32>
    %10 = vector.broadcast %9 : f32 to vector<1x1xf32>
    %cst_5 = arith.constant 3.906250e-03 : f32
    %11 = vector.broadcast %cst_5 : f32 to vector<1x1xf32>
    %12 = arith.mulf %10, %11 : vector<1x1xf32>
    %13 = arith.subf %3, %1 : vector<1x256xf32>
    %14 = vector.shape_cast %1 : vector<1x256xf32> to vector<1x1x256xf32>
    %cst_6 = arith.constant dense<0.000000e+00> : vector<1xf32>
    %15 = vector.multi_reduction <add>, %14, %cst_6 [1, 2] : vector<1x1x256xf32> to vector<1xf32>
    %16 = vector.shape_cast %15 : vector<1xf32> to vector<1x1x1xf32>
    %17 = vector.extract %16[0, 0, 0] : f32 from vector<1x1x1xf32>
    %18 = vector.broadcast %17 : f32 to vector<1x1xf32>
    %cst_7 = arith.constant 3.906250e-03 : f32
    %19 = vector.broadcast %cst_7 : f32 to vector<1x1xf32>
    %20 = arith.mulf %18, %19 : vector<1x1xf32>
    %21 = vector.broadcast %20 : vector<1x1xf32> to vector<1x256xf32>
    %22 = arith.subf %1, %21 : vector<1x256xf32>
    %23 = arith.mulf %22, %22 : vector<1x256xf32>
    %24 = vector.shape_cast %23 : vector<1x256xf32> to vector<1x1x256xf32>
    %cst_8 = arith.constant dense<0.000000e+00> : vector<1xf32>
    %25 = vector.multi_reduction <add>, %24, %cst_8 [1, 2] : vector<1x1x256xf32> to vector<1xf32>
    %26 = vector.shape_cast %25 : vector<1xf32> to vector<1x1x1xf32>
    %27 = vector.extract %26[0, 0, 0] : f32 from vector<1x1x1xf32>
    %28 = vector.broadcast %27 : f32 to vector<1x1xf32>
    %cst_9 = arith.constant 0.00392156886 : f32
    %29 = vector.broadcast %cst_9 : f32 to vector<1x1xf32>
    %30 = arith.mulf %28, %29 : vector<1x1xf32>
    %31 = math.sqrt %30 : vector<1x1xf32>
    %cst_10 = arith.constant 9.99999993E-9 : f32
    %32 = vector.broadcast %cst_10 : f32 to vector<1x1xf32>
    %33 = arith.addf %31, %32 : vector<1x1xf32>
    %34 = tpu.reciprocal %33 {approx = true} : vector<1x1xf32> -> vector<1x1xf32>
    %35 = vector.broadcast %34 : vector<1x1xf32> to vector<1x256xf32>
    %36 = arith.mulf %22, %35 : vector<1x256xf32>
    %37 = vector.shape_cast %13 : vector<1x256xf32> to vector<1x1x256xf32>
    %cst_11 = arith.constant dense<0.000000e+00> : vector<1xf32>
    %38 = vector.multi_reduction <add>, %37, %cst_11 [1, 2] : vector<1x1x256xf32> to vector<1xf32>
    %39 = vector.shape_cast %38 : vector<1xf32> to vector<1x1x1xf32>
    %40 = vector.extract %39[0, 0, 0] : f32 from vector<1x1x1xf32>
    %41 = vector.broadcast %40 : f32 to vector<1x1xf32>
    %cst_12 = arith.constant 3.906250e-03 : f32
    %42 = vector.broadcast %cst_12 : f32 to vector<1x1xf32>
    %43 = arith.mulf %41, %42 : vector<1x1xf32>
    %44 = vector.broadcast %43 : vector<1x1xf32> to vector<1x256xf32>
    %45 = arith.subf %13, %44 : vector<1x256xf32>
    %46 = arith.mulf %45, %45 : vector<1x256xf32>
    %47 = vector.shape_cast %46 : vector<1x256xf32> to vector<1x1x256xf32>
    %cst_13 = arith.constant dense<0.000000e+00> : vector<1xf32>
    %48 = vector.multi_reduction <add>, %47, %cst_13 [1, 2] : vector<1x1x256xf32> to vector<1xf32>
    %49 = vector.shape_cast %48 : vector<1xf32> to vector<1x1x1xf32>
    %50 = vector.extract %49[0, 0, 0] : f32 from vector<1x1x1xf32>
    %51 = vector.broadcast %50 : f32 to vector<1x1xf32>
    %cst_14 = arith.constant 0.00392156886 : f32
    %52 = vector.broadcast %cst_14 : f32 to vector<1x1xf32>
    %53 = arith.mulf %51, %52 : vector<1x1xf32>
    %54 = math.sqrt %53 : vector<1x1xf32>
    %cst_15 = arith.constant 9.99999993E-9 : f32
    %55 = vector.broadcast %cst_15 : f32 to vector<1x1xf32>
    %56 = arith.addf %54, %55 : vector<1x1xf32>
    %57 = tpu.reciprocal %56 {approx = true} : vector<1x1xf32> -> vector<1x1xf32>
    %58 = vector.broadcast %57 : vector<1x1xf32> to vector<1x256xf32>
    %59 = arith.mulf %45, %58 : vector<1x256xf32>
    %60 = vector.shape_cast %36 : vector<1x256xf32> to vector<1x256xf32>
    %61 = vector.broadcast %60 : vector<1x256xf32> to vector<256x256xf32>
    %62 = vector.shape_cast %59 : vector<1x256xf32> to vector<1x256xf32>
    %63 = vector.broadcast %62 : vector<1x256xf32> to vector<256x256xf32>
    %64 = tpu.transpose %61, [1, 0] : vector<256x256xf32> -> vector<256x256xf32>
    %65 = arith.subf %64, %61 : vector<256x256xf32>
    %66 = tpu.transpose %63, [1, 0] : vector<256x256xf32> -> vector<256x256xf32>
    %67 = arith.subf %66, %63 : vector<256x256xf32>
    %68 = arith.mulf %65, %65 : vector<256x256xf32>
    %cst_16 = arith.constant -4.08934975 : f32
    %69 = vector.broadcast %cst_16 : f32 to vector<256x256xf32>
    %70 = arith.mulf %68, %69 : vector<256x256xf32>
    %71 = math.exp %70 : vector<256x256xf32>
    %72 = arith.mulf %67, %67 : vector<256x256xf32>
    %cst_17 = arith.constant -4.08934975 : f32
    %73 = vector.broadcast %cst_17 : f32 to vector<256x256xf32>
    %74 = arith.mulf %72, %73 : vector<256x256xf32>
    %75 = math.exp %74 : vector<256x256xf32>
    %cst_18 = arith.constant dense<0.000000e+00> : vector<256xf32>
    %76 = vector.multi_reduction <add>, %71, %cst_18 [0] : vector<256x256xf32> to vector<256xf32>
    %77 = vector.shape_cast %76 : vector<256xf32> to vector<1x256xf32>
    %cst_19 = arith.constant 3.906250e-03 : f32
    %78 = vector.broadcast %cst_19 : f32 to vector<1x256xf32>
    %79 = arith.mulf %77, %78 : vector<1x256xf32>
    %cst_20 = arith.constant dense<0.000000e+00> : vector<256xf32>
    %80 = vector.multi_reduction <add>, %75, %cst_20 [0] : vector<256x256xf32> to vector<256xf32>
    %81 = vector.shape_cast %80 : vector<256xf32> to vector<1x256xf32>
    %cst_21 = arith.constant 3.906250e-03 : f32
    %82 = vector.broadcast %cst_21 : f32 to vector<1x256xf32>
    %83 = arith.mulf %81, %82 : vector<1x256xf32>
    %84 = arith.mulf %71, %75 : vector<256x256xf32>
    %cst_22 = arith.constant dense<0.000000e+00> : vector<256xf32>
    %85 = vector.multi_reduction <add>, %84, %cst_22 [0] : vector<256x256xf32> to vector<256xf32>
    %86 = vector.shape_cast %85 : vector<256xf32> to vector<1x256xf32>
    %cst_23 = arith.constant 3.906250e-03 : f32
    %87 = vector.broadcast %cst_23 : f32 to vector<1x256xf32>
    %88 = arith.mulf %86, %87 : vector<1x256xf32>
    %cst_24 = arith.constant 9.99999996E-13 : f32
    %89 = vector.broadcast %cst_24 : f32 to vector<1x256xf32>
    %90 = arith.addf %88, %89 : vector<1x256xf32>
    %91 = math.log %90 : vector<1x256xf32>
    %cst_25 = arith.constant 9.99999996E-13 : f32
    %92 = vector.broadcast %cst_25 : f32 to vector<1x256xf32>
    %93 = arith.addf %79, %92 : vector<1x256xf32>
    %94 = math.log %93 : vector<1x256xf32>
    %95 = arith.subf %91, %94 : vector<1x256xf32>
    %cst_26 = arith.constant 9.99999996E-13 : f32
    %96 = vector.broadcast %cst_26 : f32 to vector<1x256xf32>
    %97 = arith.addf %83, %96 : vector<1x256xf32>
    %98 = math.log %97 : vector<1x256xf32>
    %99 = arith.subf %95, %98 : vector<1x256xf32>
    %100 = vector.shape_cast %99 : vector<1x256xf32> to vector<1x1x256xf32>
    %cst_27 = arith.constant dense<0.000000e+00> : vector<1xf32>
    %101 = vector.multi_reduction <add>, %100, %cst_27 [1, 2] : vector<1x1x256xf32> to vector<1xf32>
    %102 = vector.shape_cast %101 : vector<1xf32> to vector<1x1x1xf32>
    %103 = vector.extract %102[0, 0, 0] : f32 from vector<1x1x1xf32>
    %104 = vector.broadcast %103 : f32 to vector<1x1xf32>
    %cst_28 = arith.constant 3.906250e-03 : f32
    %105 = vector.broadcast %cst_28 : f32 to vector<1x1xf32>
    %106 = arith.mulf %104, %105 : vector<1x1xf32>
    %cst_29 = arith.constant 1.000000e+00 : f32
    %107 = vector.broadcast %cst_29 : f32 to vector<1x1xf32>
    %108 = arith.mulf %12, %107 : vector<1x1xf32>
    %109 = math.absf %106 : vector<1x1xf32>
    %cst_30 = arith.constant 5.000000e-01 : f32
    %110 = vector.broadcast %cst_30 : f32 to vector<1x1xf32>
    %111 = arith.mulf %109, %110 : vector<1x1xf32>
    %112 = arith.addf %108, %111 : vector<1x1xf32>
    %113 = vector.shape_cast %112 : vector<1x1xf32> to vector<1x1x1xf32>
    %c0_31 = arith.constant 0 : index
    %c0_32 = arith.constant 0 : index
    %c0_33 = arith.constant 0 : index
    %114 = vector.load %arg3[%c0_31, %c0_32, %c0_33] : memref<1x1x1xf32, #tpu.memory_space<vmem>>, vector<1x1x1xf32>
    tpu.vector_store %arg3[%c0_31, %c0_32, %c0_33], %113 {strides = array<i32>} : memref<1x1x1xf32, #tpu.memory_space<vmem>>, vector<1x1x1xf32>,
    %115 = vector.shape_cast %12 : vector<1x1xf32> to vector<1x1x1xf32>
    %c0_34 = arith.constant 0 : index
    %c0_35 = arith.constant 0 : index
    %c0_36 = arith.constant 0 : index
    %116 = vector.load %arg4[%c0_34, %c0_35, %c0_36] : memref<1x1x1xf32, #tpu.memory_space<vmem>>, vector<1x1x1xf32>
    tpu.vector_store %arg4[%c0_34, %c0_35, %c0_36], %115 {strides = array<i32>} : memref<1x1x1xf32, #tpu.memory_space<vmem>>, vector<1x1x1xf32>,
    %117 = vector.shape_cast %106 : vector<1x1xf32> to vector<1x1x1xf32>
    %c0_37 = arith.constant 0 : index
    %c0_38 = arith.constant 0 : index
    %c0_39 = arith.constant 0 : index
    %118 = vector.load %arg5[%c0_37, %c0_38, %c0_39] : memref<1x1x1xf32, #tpu.memory_space<vmem>>, vector<1x1x1xf32>
    tpu.vector_store %arg5[%c0_37, %c0_38, %c0_39], %117 {strides = array<i32>} : memref<1x1x1xf32, #tpu.memory_space<vmem>>, vector<1x1x1xf32>,
    return
  }
  func.func @transform_0(%arg0: i32) -> (i32, i32, i32) {
    %c0_i32 = arith.constant 0 : i32
    %c0_i32_0 = arith.constant 0 : i32
    %c0_i32_1 = arith.constant 0 : i32
    return %arg0, %c0_i32, %c0_i32_0 : i32, i32, i32
  }
  func.func @transform_1(%arg0: i32) -> (i32, i32, i32) {
    %c0_i32 = arith.constant 0 : i32
    %c0_i32_0 = arith.constant 0 : i32
    %c0_i32_1 = arith.constant 0 : i32
    return %arg0, %c0_i32, %c0_i32_0 : i32, i32, i32
  }
  func.func @transform_2(%arg0: i32) -> (i32, i32, i32) {
    %c0_i32 = arith.constant 0 : i32
    %c0_i32_0 = arith.constant 0 : i32
    %c0_i32_1 = arith.constant 0 : i32
    return %arg0, %c0_i32, %c0_i32_0 : i32, i32, i32
  }
  func.func @transform_3(%arg0: i32) -> (i32, i32, i32) {
    %c0_i32 = arith.constant 0 : i32
    %c0_i32_0 = arith.constant 0 : i32
    %c0_i32_1 = arith.constant 0 : i32
    return %arg0, %c0_i32, %c0_i32_0 : i32, i32, i32
  }
  func.func @transform_4(%arg0: i32) -> (i32, i32, i32) {
    %c0_i32 = arith.constant 0 : i32
    %c0_i32_0 = arith.constant 0 : i32
    %c0_i32_1 = arith.constant 0 : i32
    return %arg0, %c0_i32, %c0_i32_0 : i32, i32, i32
  }
}

</mosaic_0001>

<llo_original>
// kernel: _mi_loss_batched.1
$region0: #{_mi_loss_batched.1}
  #allocation0 [shape = 'u32[]', space=smem, size = 0x4, offset = 0x4, fixed_abs, tag = 'smem constant byte address 0x4 - core index']
  #allocation1 [shape = 'u32[144,128]{1,0:T(1,128)}', space=vmem, size = 0x12000, scoped, tag = 'internal scratch']
  %s0 = inlined_call_operand.vmem [shape: f32[1,1,256], index: 0, kind: input, shape index: {}]
  %s1 = inlined_call_operand.vmem [shape: f32[1,1,256], index: 1, kind: input, shape index: {}]
  %s2 = inlined_call_operand.hbm [shape: f32[1,1,1], index: 2, kind: output, shape index: {0}]
  %s3 = inlined_call_operand.hbm [shape: f32[1,1,1], index: 3, kind: output, shape index: {1}]
  %s4 = inlined_call_operand.hbm [shape: f32[1,1,1], index: 4, kind: output, shape index: {2}]
  %5 = xla_tuple %s2, %s3, %s4
  %s6 = sld [smem:[#allocation0]]
  $region34: #{_mi_loss_batched.1} parent=0
    _
  %s8 = ssub.s32 1, %s6
  %s9 = scalar_select 0, %s8, %s6
  $region1: #{_mi_loss_batched.1} parent=0
    #allocation2 [shape = 'u8[512]{0}', space=vmem, size = 0x400, scoped, tag = 'output window, operand 0, single buffered']
    #allocation3 [shape = 's32[1]{0}', space=sflag, size = 0x4, scoped, tag = 'scoped memory for _mi_loss_batched.1']
    #allocation4 [shape = 'u8[512]{0}', space=vmem, size = 0x400, scoped, tag = 'output window, operand 1, single buffered']
    #allocation5 [shape = 's32[1]{0}', space=sflag, size = 0x4, scoped, tag = 'scoped memory for _mi_loss_batched.1']
    #allocation6 [shape = 'u8[512]{0}', space=vmem, size = 0x400, scoped, tag = 'output window, operand 2, single buffered']
    %10 = vsyncpa [#allocation3], 0
    %11 = vsyncpa [#allocation5], 0
    // Predicated region
    $region2: #{_mi_loss_batched.1} parent=1 // pred_check
      _
    $region3: #{_mi_loss_batched.1} parent=1 // pred_check_branch
      %13 = sbr.rel (0) target = $region5
    $region4: #{_mi_loss_batched.1} parent=1 // pred_region
      _
    $region5: #{_mi_loss_batched.1} parent=1 // pred_fallthru
      _
    // Predicated region
    $region6: #{_mi_loss_batched.1} parent=1 // pred_check
      _
    $region7: #{_mi_loss_batched.1} parent=1 // pred_check_branch
      %15 = sbr.rel (0) target = $region9
    $region8: #{_mi_loss_batched.1} parent=1 // pred_region
      _
    $region9: #{_mi_loss_batched.1} parent=1 // pred_fallthru
      _
    %v16 = vld [vmem:[%s0] sm:$0x3]
    %v17 = vld [vmem:[%s1] sm:$0x3]
    %v18 = vsub.f32 %v16, %v17
    %v19 = vmul.f32 %v18, %v18
    %v21 = vlaneseq
    %v22 = vshrl.u32 %v21, 7
    %v23 = vsub.s32 0, %v22
    %v24 = vrot.slane %v19, %v23
    %v25 = vlaneseq
    %v26 = vshrl.u32 %v25, 7
    %v27 = vsub.s32 1, %v26
    %v28 = vrot.slane %v19, %v27
    %vm31 = vcmask 1040384
    %v32 = vsel %vm31, %v24, 0.0
    %v33 = vsel %vm31, %v28, 0.0
    %v34 = vadd.f32 %v32, %v33
    %35 = vadd.xlane.f32.xlu0 %v34
    %v36 = vpop.xlane.xlu0 %35
    %v37 = vrot.slane %v36, 4
    %v38 = vadd.f32 %v36, %v37
    %v39 = vrot.slane %v38, 2
    %v40 = vadd.f32 %v38, %v39
    %v41 = vrot.slane %v40, 1
    %v42 = vadd.f32 %v40, %v41
    %s43 = vtos %v42
    %v44 = vstv %s43
    %v45 = vmul.f32 %v44, 0.00390625
    %v46 = vsub.f32 %v17, %v16
    %v48 = vlaneseq
    %v49 = vshrl.u32 %v48, 7
    %v50 = vsub.s32 0, %v49
    %v51 = vrot.slane %v16, %v50
    %v52 = vlaneseq
    %v53 = vshrl.u32 %v52, 7
    %v54 = vsub.s32 1, %v53
    %v55 = vrot.slane %v16, %v54
    %v58 = vsel %vm31, %v51, 0.0
    %v59 = vsel %vm31, %v55, 0.0
    %v60 = vadd.f32 %v58, %v59
    %61 = vadd.xlane.f32.xlu0 %v60
    %v62 = vpop.xlane.xlu0 %61
    %v63 = vrot.slane %v62, 4
    %v64 = vadd.f32 %v62, %v63
    %v65 = vrot.slane %v64, 2
    %v66 = vadd.f32 %v64, %v65
    %v67 = vrot.slane %v66, 1
    %v68 = vadd.f32 %v66, %v67
    %s69 = vtos %v68
    %v70 = vstv %s69
    %v71 = vmul.f32 %v70, 0.00390625
    %v72 = vsub.f32 %v16, %v71
    %v73 = vmul.f32 %v72, %v72
    %v75 = vlaneseq
    %v76 = vshrl.u32 %v75, 7
    %v77 = vsub.s32 0, %v76
    %v78 = vrot.slane %v73, %v77
    %v79 = vlaneseq
    %v80 = vshrl.u32 %v79, 7
    %v81 = vsub.s32 1, %v80
    %v82 = vrot.slane %v73, %v81
    %v85 = vsel %vm31, %v78, 0.0
    %v86 = vsel %vm31, %v82, 0.0
    %v87 = vadd.f32 %v85, %v86
    %88 = vadd.xlane.f32.xlu0 %v87
    %v89 = vpop.xlane.xlu0 %88
    %v90 = vrot.slane %v89, 4
    %v91 = vadd.f32 %v89, %v90
    %v92 = vrot.slane %v91, 2
    %v93 = vadd.f32 %v91, %v92
    %v94 = vrot.slane %v93, 1
    %v95 = vadd.f32 %v93, %v94
    %s96 = vtos %v95
    %v97 = vstv %s96
    %v98 = vmul.f32 %v97, 0.003921569
    %v99 = vrsqrt.pop %v98
    %v100 = vmul.f32 %v98, %v99
    %vm101 = vcmp.eq.f32.partialorder %v98, inf
    %v102 = vsel %vm101, %v98, %v100
    %vm103 = vcmp.eq.f32.partialorder %v98, 0.0
    %v104 = vand.u32 %v98, 2147483648
    %v105 = vsel %vm103, %v104, %v102
    %v106 = vadd.f32 %v105, 1e-08
    %v107 = vrcp.pop %v106
    %v108 = vmul.f32 %v72, %v107
    %v110 = vlaneseq
    %v111 = vshrl.u32 %v110, 7
    %v112 = vsub.s32 0, %v111
    %v113 = vrot.slane %v46, %v112
    %v114 = vlaneseq
    %v115 = vshrl.u32 %v114, 7
    %v116 = vsub.s32 1, %v115
    %v117 = vrot.slane %v46, %v116
    %v120 = vsel %vm31, %v113, 0.0
    %v121 = vsel %vm31, %v117, 0.0
    %v122 = vadd.f32 %v120, %v121
    %123 = vadd.xlane.f32.xlu0 %v122
    %v124 = vpop.xlane.xlu0 %123
    %v125 = vrot.slane %v124, 4
    %v126 = vadd.f32 %v124, %v125
    %v127 = vrot.slane %v126, 2
    %v128 = vadd.f32 %v126, %v127
    %v129 = vrot.slane %v128, 1
    %v130 = vadd.f32 %v128, %v129
    %s131 = vtos %v130
    %v132 = vstv %s131
    %v133 = vmul.f32 %v132, 0.00390625
    %v134 = vsub.f32 %v46, %v133
    %v135 = vmul.f32 %v134, %v134
    %v137 = vlaneseq
    %v138 = vshrl.u32 %v137, 7
    %v139 = vsub.s32 0, %v138
    %v140 = vrot.slane %v135, %v139
    %v141 = vlaneseq
    %v142 = vshrl.u32 %v141, 7
    %v143 = vsub.s32 1, %v142
    %v144 = vrot.slane %v135, %v143
    %v147 = vsel %vm31, %v140, 0.0
    %v148 = vsel %vm31, %v144, 0.0
    %v149 = vadd.f32 %v147, %v148
    %150 = vadd.xlane.f32.xlu0 %v149
    %v151 = vpop.xlane.xlu0 %150
    %v152 = vrot.slane %v151, 4
    %v153 = vadd.f32 %v151, %v152
    %v154 = vrot.slane %v153, 2
    %v155 = vadd.f32 %v153, %v154
    %v156 = vrot.slane %v155, 1
    %v157 = vadd.f32 %v155, %v156
    %s158 = vtos %v157
    %v159 = vstv %s158
    %v160 = vmul.f32 %v159, 0.003921569
    %v161 = vrsqrt.pop %v160
    %v162 = vmul.f32 %v160, %v161
    %vm163 = vcmp.eq.f32.partialorder %v160, inf
    %v164 = vsel %vm163, %v160, %v162
    %vm165 = vcmp.eq.f32.partialorder %v160, 0.0
    %v166 = vand.u32 %v160, 2147483648
    %v167 = vsel %vm165, %v166, %v164
    %v168 = vadd.f32 %v167, 1e-08
    %v169 = vrcp.pop %v168
    %v170 = vmul.f32 %v134, %v169
    %v172 = vlaneseq
    %v173 = vshrl.u32 %v172, 7
    %v174 = vsub.s32 0, %v173
    %v175 = vrot.slane %v108, %v174
    %v176 = vlaneseq
    %v177 = vshrl.u32 %v176, 7
    %v178 = vsub.s32 1, %v177
    %v179 = vrot.slane %v108, %v178
    %v183 = vlaneseq
    %v184 = vshrl.u32 %v183, 7
    %v185 = vsub.s32 0, %v184
    %v186 = vrot.slane %v170, %v185
    %v187 = vlaneseq
    %v188 = vshrl.u32 %v187, 7
    %v189 = vsub.s32 1, %v188
    %v190 = vrot.slane %v170, %v189
    %193 = vxpose.xlu0.b32.start [1/16] %v175, 128
    %194 = vxpose.xlu0.b32.cont [2/16] %v175, 128
    %195 = vxpose.xlu0.b32.cont [3/16] %v175, 128
    %196 = vxpose.xlu0.b32.cont [4/16] %v175, 128
    %197 = vxpose.xlu0.b32.cont [5/16] %v175, 128
    %198 = vxpose.xlu0.b32.cont [6/16] %v175, 128
    %199 = vxpose.xlu0.b32.cont [7/16] %v175, 128
    %200 = vxpose.xlu0.b32.cont [8/16] %v175, 128
    %201 = vxpose.xlu0.b32.cont [9/16] %v175, 128
    %202 = vxpose.xlu0.b32.cont [10/16] %v175, 128
    %203 = vxpose.xlu0.b32.cont [11/16] %v175, 128
    %204 = vxpose.xlu0.b32.cont [12/16] %v175, 128
    %205 = vxpose.xlu0.b32.cont [13/16] %v175, 128
    %206 = vxpose.xlu0.b32.cont [14/16] %v175, 128
    %207 = vxpose.xlu0.b32.cont [15/16] %v175, 128
    %208 = vxpose.xlu0.b32.end [16/16] %v175, 128
    %v209 = vpop.trf.xlu0
    %v210 = vpop.trf.xlu0
    %v211 = vpop.trf.xlu0
    %v212 = vpop.trf.xlu0
    %v213 = vpop.trf.xlu0
    %v214 = vpop.trf.xlu0
    %v215 = vpop.trf.xlu0
    %v216 = vpop.trf.xlu0
    %v217 = vpop.trf.xlu0
    %v218 = vpop.trf.xlu0
    %v219 = vpop.trf.xlu0
    %v220 = vpop.trf.xlu0
    %v221 = vpop.trf.xlu0
    %v222 = vpop.trf.xlu0
    %v223 = vpop.trf.xlu0
    %v224 = vpop.trf.xlu0
    %225 = vxpose.xlu0.b32.start [1/16] %v179, 128
    %226 = vxpose.xlu0.b32.cont [2/16] %v179, 128
    %227 = vxpose.xlu0.b32.cont [3/16] %v179, 128
    %228 = vxpose.xlu0.b32.cont [4/16] %v179, 128
    %229 = vxpose.xlu0.b32.cont [5/16] %v179, 128
    %230 = vxpose.xlu0.b32.cont [6/16] %v179, 128
    %231 = vxpose.xlu0.b32.cont [7/16] %v179, 128
    %232 = vxpose.xlu0.b32.cont [8/16] %v179, 128
    %233 = vxpose.xlu0.b32.cont [9/16] %v179, 128
    %234 = vxpose.xlu0.b32.cont [10/16] %v179, 128
    %235 = vxpose.xlu0.b32.cont [11/16] %v179, 128
    %236 = vxpose.xlu0.b32.cont [12/16] %v179, 128
    %237 = vxpose.xlu0.b32.cont [13/16] %v179, 128
    %238 = vxpose.xlu0.b32.cont [14/16] %v179, 128
    %239 = vxpose.xlu0.b32.cont [15/16] %v179, 128
    %240 = vxpose.xlu0.b32.end [16/16] %v179, 128
    %v241 = vpop.trf.xlu0
    %v242 = vpop.trf.xlu0
    %v243 = vpop.trf.xlu0
    %v244 = vpop.trf.xlu0
    %v245 = vpop.trf.xlu0
    %v246 = vpop.trf.xlu0
    %v247 = vpop.trf.xlu0
    %v248 = vpop.trf.xlu0
    %v249 = vpop.trf.xlu0
    %v250 = vpop.trf.xlu0
    %v251 = vpop.trf.xlu0
    %v252 = vpop.trf.xlu0
    %v253 = vpop.trf.xlu0
    %v254 = vpop.trf.xlu0
    %v255 = vpop.trf.xlu0
    %v256 = vpop.trf.xlu0
    %v257 = vsub.f32 %v209, %v175
    %v258 = vsub.f32 %v209, %v179
    %v259 = vsub.f32 %v210, %v175
    %v260 = vsub.f32 %v210, %v179
    %v261 = vsub.f32 %v211, %v175
    %v262 = vsub.f32 %v211, %v179
    %v263 = vsub.f32 %v212, %v175
    %v264 = vsub.f32 %v212, %v179
    %v265 = vsub.f32 %v213, %v175
    %v266 = vsub.f32 %v213, %v179
    %v267 = vsub.f32 %v214, %v175
    %v268 = vsub.f32 %v214, %v179
    %v269 = vsub.f32 %v215, %v175
    %v270 = vsub.f32 %v215, %v179
    %v271 = vsub.f32 %v216, %v175
    %v272 = vsub.f32 %v216, %v179
    %v273 = vsub.f32 %v217, %v175
    %v274 = vsub.f32 %v217, %v179
    %v275 = vsub.f32 %v218, %v175
    %v276 = vsub.f32 %v218, %v179
    %v277 = vsub.f32 %v219, %v175
    %v278 = vsub.f32 %v219, %v179
    %v279 = vsub.f32 %v220, %v175
    %v280 = vsub.f32 %v220, %v179
    %v281 = vsub.f32 %v221, %v175
    %v282 = vsub.f32 %v221, %v179
    %v283 = vsub.f32 %v222, %v175
    %v284 = vsub.f32 %v222, %v179
    %v285 = vsub.f32 %v223, %v175
    %v286 = vsub.f32 %v223, %v179
    %v287 = vsub.f32 %v224, %v175
    %v288 = vsub.f32 %v224, %v179
    %v289 = vsub.f32 %v241, %v175
    %v290 = vsub.f32 %v241, %v179
    %v291 = vsub.f32 %v242, %v175
    %v292 = vsub.f32 %v242, %v179
    %v293 = vsub.f32 %v243, %v175
    %v294 = vsub.f32 %v243, %v179
    %v295 = vsub.f32 %v244, %v175
    %v296 = vsub.f32 %v244, %v179
    %v297 = vsub.f32 %v245, %v175
    %v298 = vsub.f32 %v245, %v179
    %v299 = vsub.f32 %v246, %v175
    %v300 = vsub.f32 %v246, %v179
    %v301 = vsub.f32 %v247, %v175
    %v302 = vsub.f32 %v247, %v179
    %v303 = vsub.f32 %v248, %v175
    %v304 = vsub.f32 %v248, %v179
    %v305 = vsub.f32 %v249, %v175
    %v306 = vsub.f32 %v249, %v179
    %v307 = vsub.f32 %v250, %v175
    %v308 = vsub.f32 %v250, %v179
    %v309 = vsub.f32 %v251, %v175
    %v310 = vsub.f32 %v251, %v179
    %v311 = vsub.f32 %v252, %v175
    %v312 = vsub.f32 %v252, %v179
    %v313 = vsub.f32 %v253, %v175
    %v314 = vsub.f32 %v253, %v179
    %v315 = vsub.f32 %v254, %v175
    %v316 = vsub.f32 %v254, %v179
    %v317 = vsub.f32 %v255, %v175
    %v318 = vsub.f32 %v255, %v179
    %v319 = vsub.f32 %v256, %v175
    %v320 = vsub.f32 %v256, %v179
    %321 = vxpose.xlu0.b32.start [1/16] %v186, 128
    %322 = vxpose.xlu0.b32.cont [2/16] %v186, 128
    %323 = vxpose.xlu0.b32.cont [3/16] %v186, 128
    %324 = vxpose.xlu0.b32.cont [4/16] %v186, 128
    %325 = vxpose.xlu0.b32.cont [5/16] %v186, 128
    %326 = vxpose.xlu0.b32.cont [6/16] %v186, 128
    %327 = vxpose.xlu0.b32.cont [7/16] %v186, 128
    %328 = vxpose.xlu0.b32.cont [8/16] %v186, 128
    %329 = vxpose.xlu0.b32.cont [9/16] %v186, 128
    %330 = vxpose.xlu0.b32.cont [10/16] %v186, 128
    %331 = vxpose.xlu0.b32.cont [11/16] %v186, 128
    %332 = vxpose.xlu0.b32.cont [12/16] %v186, 128
    %333 = vxpose.xlu0.b32.cont [13/16] %v186, 128
    %334 = vxpose.xlu0.b32.cont [14/16] %v186, 128
    %335 = vxpose.xlu0.b32.cont [15/16] %v186, 128
    %336 = vxpose.xlu0.b32.end [16/16] %v186, 128
    %v337 = vpop.trf.xlu0
    %v338 = vpop.trf.xlu0
    %v339 = vpop.trf.xlu0
    %v340 = vpop.trf.xlu0
    %v341 = vpop.trf.xlu0
    %v342 = vpop.trf.xlu0
    %v343 = vpop.trf.xlu0
    %v344 = vpop.trf.xlu0
    %v345 = vpop.trf.xlu0
    %v346 = vpop.trf.xlu0
    %v347 = vpop.trf.xlu0
    %v348 = vpop.trf.xlu0
    %v349 = vpop.trf.xlu0
    %v350 = vpop.trf.xlu0
    %v351 = vpop.trf.xlu0
    %v352 = vpop.trf.xlu0
    %353 = vxpose.xlu0.b32.start [1/16] %v190, 128
    %354 = vxpose.xlu0.b32.cont [2/16] %v190, 128
    %355 = vxpose.xlu0.b32.cont [3/16] %v190, 128
    %356 = vxpose.xlu0.b32.cont [4/16] %v190, 128
    %357 = vxpose.xlu0.b32.cont [5/16] %v190, 128
    %358 = vxpose.xlu0.b32.cont [6/16] %v190, 128
    %359 = vxpose.xlu0.b32.cont [7/16] %v190, 128
    %360 = vxpose.xlu0.b32.cont [8/16] %v190, 128
    %361 = vxpose.xlu0.b32.cont [9/16] %v190, 128
    %362 = vxpose.xlu0.b32.cont [10/16] %v190, 128
    %363 = vxpose.xlu0.b32.cont [11/16] %v190, 128
    %364 = vxpose.xlu0.b32.cont [12/16] %v190, 128
    %365 = vxpose.xlu0.b32.cont [13/16] %v190, 128
    %366 = vxpose.xlu0.b32.cont [14/16] %v190, 128
    %367 = vxpose.xlu0.b32.cont [15/16] %v190, 128
    %368 = vxpose.xlu0.b32.end [16/16] %v190, 128
    %v369 = vpop.trf.xlu0
    %v370 = vpop.trf.xlu0
    %v371 = vpop.trf.xlu0
    %v372 = vpop.trf.xlu0
    %v373 = vpop.trf.xlu0
    %v374 = vpop.trf.xlu0
    %v375 = vpop.trf.xlu0
    %v376 = vpop.trf.xlu0
    %v377 = vpop.trf.xlu0
    %v378 = vpop.trf.xlu0
    %v379 = vpop.trf.xlu0
    %v380 = vpop.trf.xlu0
    %v381 = vpop.trf.xlu0
    %v382 = vpop.trf.xlu0
    %v383 = vpop.trf.xlu0
    %v384 = vpop.trf.xlu0
    %v385 = vsub.f32 %v337, %v186
    %v386 = vsub.f32 %v337, %v190
    %v387 = vsub.f32 %v338, %v186
    %v388 = vsub.f32 %v338, %v190
    %v389 = vsub.f32 %v339, %v186
    %v390 = vsub.f32 %v339, %v190
    %v391 = vsub.f32 %v340, %v186
    %v392 = vsub.f32 %v340, %v190
    %v393 = vsub.f32 %v341, %v186
    %v394 = vsub.f32 %v341, %v190
    %v395 = vsub.f32 %v342, %v186
    %v396 = vsub.f32 %v342, %v190
    %v397 = vsub.f32 %v343, %v186
    %v398 = vsub.f32 %v343, %v190
    %v399 = vsub.f32 %v344, %v186
    %v400 = vsub.f32 %v344, %v190
    %v401 = vsub.f32 %v345, %v186
    %v402 = vsub.f32 %v345, %v190
    %v403 = vsub.f32 %v346, %v186
    %v404 = vsub.f32 %v346, %v190
    %v405 = vsub.f32 %v347, %v186
    %v406 = vsub.f32 %v347, %v190
    %v407 = vsub.f32 %v348, %v186
    %v408 = vsub.f32 %v348, %v190
    %v409 = vsub.f32 %v349, %v186
    %v410 = vsub.f32 %v349, %v190
    %v411 = vsub.f32 %v350, %v186
    %v412 = vsub.f32 %v350, %v190
    %v413 = vsub.f32 %v351, %v186
    %v414 = vsub.f32 %v351, %v190
    %v415 = vsub.f32 %v352, %v186
    %v416 = vsub.f32 %v352, %v190
    %v417 = vsub.f32 %v369, %v186
    %v418 = vsub.f32 %v369, %v190
    %v419 = vsub.f32 %v370, %v186
    %v420 = vsub.f32 %v370, %v190
    %v421 = vsub.f32 %v371, %v186
    %v422 = vsub.f32 %v371, %v190
    %v423 = vsub.f32 %v372, %v186
    %v424 = vsub.f32 %v372, %v190
    %v425 = vsub.f32 %v373, %v186
    %v426 = vsub.f32 %v373, %v190
    %v427 = vsub.f32 %v374, %v186
    %v428 = vsub.f32 %v374, %v190
    %v429 = vsub.f32 %v375, %v186
    %v430 = vsub.f32 %v375, %v190
    %v431 = vsub.f32 %v376, %v186
    %v432 = vsub.f32 %v376, %v190
    %v433 = vsub.f32 %v377, %v186
    %v434 = vsub.f32 %v377, %v190
    %v435 = vsub.f32 %v378, %v186
    %v436 = vsub.f32 %v378, %v190
    %v437 = vsub.f32 %v379, %v186
    %v438 = vsub.f32 %v379, %v190
    %v439 = vsub.f32 %v380, %v186
    %v440 = vsub.f32 %v380, %v190
    %v441 = vsub.f32 %v381, %v186
    %v442 = vsub.f32 %v381, %v190
    %v443 = vsub.f32 %v382, %v186
    %v444 = vsub.f32 %v382, %v190
    %v445 = vsub.f32 %v383, %v186
    %v446 = vsub.f32 %v383, %v190
    %v447 = vsub.f32 %v384, %v186
    %v448 = vsub.f32 %v384, %v190
    %v449 = vmul.f32 %v257, %v257
    %v450 = vmul.f32 %v258, %v258
    %v451 = vmul.f32 %v259, %v259
    %v452 = vmul.f32 %v260, %v260
    %v453 = vmul.f32 %v261, %v261
    %v454 = vmul.f32 %v262, %v262
    %v455 = vmul.f32 %v263, %v263
    %v456 = vmul.f32 %v264, %v264
    %v457 = vmul.f32 %v265, %v265
    %v458 = vmul.f32 %v266, %v266
    %v459 = vmul.f32 %v267, %v267
    %v460 = vmul.f32 %v268, %v268
    %v461 = vmul.f32 %v269, %v269
    %v462 = vmul.f32 %v270, %v270
    %v463 = vmul.f32 %v271, %v271
    %v464 = vmul.f32 %v272, %v272
    %v465 = vmul.f32 %v273, %v273
    %v466 = vmul.f32 %v274, %v274
    %v467 = vmul.f32 %v275, %v275
    %v468 = vmul.f32 %v276, %v276
    %v469 = vmul.f32 %v277, %v277
    %v470 = vmul.f32 %v278, %v278
    %v471 = vmul.f32 %v279, %v279
    %v472 = vmul.f32 %v280, %v280
    %v473 = vmul.f32 %v281, %v281
    %v474 = vmul.f32 %v282, %v282
    %v475 = vmul.f32 %v283, %v283
    %v476 = vmul.f32 %v284, %v284
    %v477 = vmul.f32 %v285, %v285
    %v478 = vmul.f32 %v286, %v286
    %v479 = vmul.f32 %v287, %v287
    %v480 = vmul.f32 %v288, %v288
    %v481 = vmul.f32 %v289, %v289
    %v482 = vmul.f32 %v290, %v290
    %v483 = vmul.f32 %v291, %v291
    %v484 = vmul.f32 %v292, %v292
    %v485 = vmul.f32 %v293, %v293
    %v486 = vmul.f32 %v294, %v294
    %v487 = vmul.f32 %v295, %v295
    %v488 = vmul.f32 %v296, %v296
    %v489 = vmul.f32 %v297, %v297
    %v490 = vmul.f32 %v298, %v298
    %v491 = vmul.f32 %v299, %v299
    %v492 = vmul.f32 %v300, %v300
    %v493 = vmul.f32 %v301, %v301
    %v494 = vmul.f32 %v302, %v302
    %v495 = vmul.f32 %v303, %v303
    %v496 = vmul.f32 %v304, %v304
    %v497 = vmul.f32 %v305, %v305
    %v498 = vmul.f32 %v306, %v306
    %v499 = vmul.f32 %v307, %v307
    %v500 = vmul.f32 %v308, %v308
    %v501 = vmul.f32 %v309, %v309
    %v502 = vmul.f32 %v310, %v310
    %v503 = vmul.f32 %v311, %v311
    %v504 = vmul.f32 %v312, %v312
    %v505 = vmul.f32 %v313, %v313
    %v506 = vmul.f32 %v314, %v314
    %v507 = vmul.f32 %v315, %v315
    %v508 = vmul.f32 %v316, %v316
    %v509 = vmul.f32 %v317, %v317
    %v510 = vmul.f32 %v318, %v318
    %v511 = vmul.f32 %v319, %v319
    %v512 = vmul.f32 %v320, %v320
    %v513 = vmul.f32 %v449, -4.0893497
    %v514 = vmul.f32 %v450, -4.0893497
    %v515 = vmul.f32 %v451, -4.0893497
    %v516 = vmul.f32 %v452, -4.0893497
    %v517 = vmul.f32 %v453, -4.0893497
    %v518 = vmul.f32 %v454, -4.0893497
    %v519 = vmul.f32 %v455, -4.0893497
    %v520 = vmul.f32 %v456, -4.0893497
    %v521 = vmul.f32 %v457, -4.0893497
    %v522 = vmul.f32 %v458, -4.0893497
    %v523 = vmul.f32 %v459, -4.0893497
    %v524 = vmul.f32 %v460, -4.0893497
    %v525 = vmul.f32 %v461, -4.0893497
    %v526 = vmul.f32 %v462, -4.0893497
    %v527 = vmul.f32 %v463, -4.0893497
    %v528 = vmul.f32 %v464, -4.0893497
    %v529 = vmul.f32 %v465, -4.0893497
    %v530 = vmul.f32 %v466, -4.0893497
    %v531 = vmul.f32 %v467, -4.0893497
    %v532 = vmul.f32 %v468, -4.0893497
    %v533 = vmul.f32 %v469, -4.0893497
    %v534 = vmul.f32 %v470, -4.0893497
    %v535 = vmul.f32 %v471, -4.0893497
    %v536 = vmul.f32 %v472, -4.0893497
    %v537 = vmul.f32 %v473, -4.0893497
    %v538 = vmul.f32 %v474, -4.0893497
    %v539 = vmul.f32 %v475, -4.0893497
    %v540 = vmul.f32 %v476, -4.0893497
    %v541 = vmul.f32 %v477, -4.0893497
    %v542 = vmul.f32 %v478, -4.0893497
    %v543 = vmul.f32 %v479, -4.0893497
    %v544 = vmul.f32 %v480, -4.0893497
    %v545 = vmul.f32 %v481, -4.0893497
    %v546 = vmul.f32 %v482, -4.0893497
    %v547 = vmul.f32 %v483, -4.0893497
    %v548 = vmul.f32 %v484, -4.0893497
    %v549 = vmul.f32 %v485, -4.0893497
    %v550 = vmul.f32 %v486, -4.0893497
    %v551 = vmul.f32 %v487, -4.0893497
    %v552 = vmul.f32 %v488, -4.0893497
    %v553 = vmul.f32 %v489, -4.0893497
    %v554 = vmul.f32 %v490, -4.0893497
    %v555 = vmul.f32 %v491, -4.0893497
    %v556 = vmul.f32 %v492, -4.0893497
    %v557 = vmul.f32 %v493, -4.0893497
    %v558 = vmul.f32 %v494, -4.0893497
    %v559 = vmul.f32 %v495, -4.0893497
    %v560 = vmul.f32 %v496, -4.0893497
    %v561 = vmul.f32 %v497, -4.0893497
    %v562 = vmul.f32 %v498, -4.0893497
    %v563 = vmul.f32 %v499, -4.0893497
    %v564 = vmul.f32 %v500, -4.0893497
    %v565 = vmul.f32 %v501, -4.0893497
    %v566 = vmul.f32 %v502, -4.0893497
    %v567 = vmul.f32 %v503, -4.0893497
    %v568 = vmul.f32 %v504, -4.0893497
    %v569 = vmul.f32 %v505, -4.0893497
    %v570 = vmul.f32 %v506, -4.0893497
    %v571 = vmul.f32 %v507, -4.0893497
    %v572 = vmul.f32 %v508, -4.0893497
    %v573 = vmul.f32 %v509, -4.0893497
    %v574 = vmul.f32 %v510, -4.0893497
    %v575 = vmul.f32 %v511, -4.0893497
    %v576 = vmul.f32 %v512, -4.0893497
    %v577 = vmul.f32 %v513, 1.442695
    %v578 = vpow.pop %v577
    %v579 = vmul.f32 %v514, 1.442695
    %v580 = vpow.pop %v579
    %v581 = vmul.f32 %v515, 1.442695
    %v582 = vpow.pop %v581
    %v583 = vmul.f32 %v516, 1.442695
    %v584 = vpow.pop %v583
    %v585 = vmul.f32 %v517, 1.442695
    %v586 = vpow.pop %v585
    %v587 = vmul.f32 %v518, 1.442695
    %v588 = vpow.pop %v587
    %v589 = vmul.f32 %v519, 1.442695
    %v590 = vpow.pop %v589
    %v591 = vmul.f32 %v520, 1.442695
    %v592 = vpow.pop %v591
    %v593 = vmul.f32 %v521, 1.442695
    %v594 = vpow.pop %v593
    %v595 = vmul.f32 %v522, 1.442695
    %v596 = vpow.pop %v595
    %v597 = vmul.f32 %v523, 1.442695
    %v598 = vpow.pop %v597
    %v599 = vmul.f32 %v524, 1.442695
    %v600 = vpow.pop %v599
    %v601 = vmul.f32 %v525, 1.442695
    %v602 = vpow.pop %v601
    %v603 = vmul.f32 %v526, 1.442695
    %v604 = vpow.pop %v603
    %v605 = vmul.f32 %v527, 1.442695
    %v606 = vpow.pop %v605
    %v607 = vmul.f32 %v528, 1.442695
    %v608 = vpow.pop %v607
    %v609 = vmul.f32 %v529, 1.442695
    %v610 = vpow.pop %v609
    %v611 = vmul.f32 %v530, 1.442695
    %v612 = vpow.pop %v611
    %v613 = vmul.f32 %v531, 1.442695
    %v614 = vpow.pop %v613
    %v615 = vmul.f32 %v532, 1.442695
    %v616 = vpow.pop %v615
    %v617 = vmul.f32 %v533, 1.442695
    %v618 = vpow.pop %v617
    %v619 = vmul.f32 %v534, 1.442695
    %v620 = vpow.pop %v619
    %v621 = vmul.f32 %v535, 1.442695
    %v622 = vpow.pop %v621
    %v623 = vmul.f32 %v536, 1.442695
    %v624 = vpow.pop %v623
    %v625 = vmul.f32 %v537, 1.442695
    %v626 = vpow.pop %v625
    %v627 = vmul.f32 %v538, 1.442695
    %v628 = vpow.pop %v627
    %v629 = vmul.f32 %v539, 1.442695
    %v630 = vpow.pop %v629
    %v631 = vmul.f32 %v540, 1.442695
    %v632 = vpow.pop %v631
    %v633 = vmul.f32 %v541, 1.442695
    %v634 = vpow.pop %v633
    %v635 = vmul.f32 %v542, 1.442695
    %v636 = vpow.pop %v635
    %v637 = vmul.f32 %v543, 1.442695
    %v638 = vpow.pop %v637
    %v639 = vmul.f32 %v544, 1.442695
    %v640 = vpow.pop %v639
    %v641 = vmul.f32 %v545, 1.442695
    %v642 = vpow.pop %v641
    %v643 = vmul.f32 %v546, 1.442695
    %v644 = vpow.pop %v643
    %v645 = vmul.f32 %v547, 1.442695
    %v646 = vpow.pop %v645
    %v647 = vmul.f32 %v548, 1.442695
    %v648 = vpow.pop %v647
    %v649 = vmul.f32 %v549, 1.442695
    %v650 = vpow.pop %v649
    %v651 = vmul.f32 %v550, 1.442695
    %v652 = vpow.pop %v651
    %v653 = vmul.f32 %v551, 1.442695
    %v654 = vpow.pop %v653
    %v655 = vmul.f32 %v552, 1.442695
    %v656 = vpow.pop %v655
    %v657 = vmul.f32 %v553, 1.442695
    %v658 = vpow.pop %v657
    %v659 = vmul.f32 %v554, 1.442695
    %v660 = vpow.pop %v659
    %v661 = vmul.f32 %v555, 1.442695
    %v662 = vpow.pop %v661
    %v663 = vmul.f32 %v556, 1.442695
    %v664 = vpow.pop %v663
    %v665 = vmul.f32 %v557, 1.442695
    %v666 = vpow.pop %v665
    %v667 = vmul.f32 %v558, 1.442695
    %v668 = vpow.pop %v667
    %v669 = vmul.f32 %v559, 1.442695
    %v670 = vpow.pop %v669
    %v671 = vmul.f32 %v560, 1.442695
    %v672 = vpow.pop %v671
    %v673 = vmul.f32 %v561, 1.442695
    %v674 = vpow.pop %v673
    %v675 = vmul.f32 %v562, 1.442695
    %v676 = vpow.pop %v675
    %v677 = vmul.f32 %v563, 1.442695
    %v678 = vpow.pop %v677
    %v679 = vmul.f32 %v564, 1.442695
    %v680 = vpow.pop %v679
    %v681 = vmul.f32 %v565, 1.442695
    %v682 = vpow.pop %v681
    %v683 = vmul.f32 %v566, 1.442695
    %v684 = vpow.pop %v683
    %v685 = vmul.f32 %v567, 1.442695
    %v686 = vpow.pop %v685
    %v687 = vmul.f32 %v568, 1.442695
    %v688 = vpow.pop %v687
    %v689 = vmul.f32 %v569, 1.442695
    %v690 = vpow.pop %v689
    %v691 = vmul.f32 %v570, 1.442695
    %v692 = vpow.pop %v691
    %v693 = vmul.f32 %v571, 1.442695
    %v694 = vpow.pop %v693
    %v695 = vmul.f32 %v572, 1.442695
    %v696 = vpow.pop %v695
    %v697 = vmul.f32 %v573, 1.442695
    %v698 = vpow.pop %v697
    %v699 = vmul.f32 %v574, 1.442695
    %v700 = vpow.pop %v699
    %v701 = vmul.f32 %v575, 1.442695
    %v702 = vpow.pop %v701
    %v703 = vmul.f32 %v576, 1.442695
    %v704 = vpow.pop %v703
    %v705 = vmul.f32 %v385, %v385
    %v706 = vmul.f32 %v386, %v386
    %v707 = vmul.f32 %v387, %v387
    %v708 = vmul.f32 %v388, %v388
    %v709 = vmul.f32 %v389, %v389
    %v710 = vmul.f32 %v390, %v390
    %v711 = vmul.f32 %v391, %v391
    %v712 = vmul.f32 %v392, %v392
    %v713 = vmul.f32 %v393, %v393
    %v714 = vmul.f32 %v394, %v394
    %v715 = vmul.f32 %v395, %v395
    %v716 = vmul.f32 %v396, %v396
    %v717 = vmul.f32 %v397, %v397
    %v718 = vmul.f32 %v398, %v398
    %v719 = vmul.f32 %v399, %v399
    %v720 = vmul.f32 %v400, %v400
    %v721 = vmul.f32 %v401, %v401
    %v722 = vmul.f32 %v402, %v402
    %v723 = vmul.f32 %v403, %v403
    %v724 = vmul.f32 %v404, %v404
    %v725 = vmul.f32 %v405, %v405
    %v726 = vmul.f32 %v406, %v406
    %v727 = vmul.f32 %v407, %v407
    %v728 = vmul.f32 %v408, %v408
    %v729 = vmul.f32 %v409, %v409
    %v730 = vmul.f32 %v410, %v410
    %v731 = vmul.f32 %v411, %v411
    %v732 = vmul.f32 %v412, %v412
    %v733 = vmul.f32 %v413, %v413
    %v734 = vmul.f32 %v414, %v414
    %v735 = vmul.f32 %v415, %v415
    %v736 = vmul.f32 %v416, %v416
    %v737 = vmul.f32 %v417, %v417
    %v738 = vmul.f32 %v418, %v418
    %v739 = vmul.f32 %v419, %v419
    %v740 = vmul.f32 %v420, %v420
    %v741 = vmul.f32 %v421, %v421
    %v742 = vmul.f32 %v422, %v422
    %v743 = vmul.f32 %v423, %v423
    %v744 = vmul.f32 %v424, %v424
    %v745 = vmul.f32 %v425, %v425
    %v746 = vmul.f32 %v426, %v426
    %v747 = vmul.f32 %v427, %v427
    %v748 = vmul.f32 %v428, %v428
    %v749 = vmul.f32 %v429, %v429
    %v750 = vmul.f32 %v430, %v430
    %v751 = vmul.f32 %v431, %v431
    %v752 = vmul.f32 %v432, %v432
    %v753 = vmul.f32 %v433, %v433
    %v754 = vmul.f32 %v434, %v434
    %v755 = vmul.f32 %v435, %v435
    %v756 = vmul.f32 %v436, %v436
    %v757 = vmul.f32 %v437, %v437
    %v758 = vmul.f32 %v438, %v438
    %v759 = vmul.f32 %v439, %v439
    %v760 = vmul.f32 %v440, %v440
    %v761 = vmul.f32 %v441, %v441
    %v762 = vmul.f32 %v442, %v442
    %v763 = vmul.f32 %v443, %v443
    %v764 = vmul.f32 %v444, %v444
    %v765 = vmul.f32 %v445, %v445
    %v766 = vmul.f32 %v446, %v446
    %v767 = vmul.f32 %v447, %v447
    %v768 = vmul.f32 %v448, %v448
    %v769 = vmul.f32 %v705, -4.0893497
    %v770 = vmul.f32 %v706, -4.0893497
    %v771 = vmul.f32 %v707, -4.0893497
    %v772 = vmul.f32 %v708, -4.0893497
    %v773 = vmul.f32 %v709, -4.0893497
    %v774 = vmul.f32 %v710, -4.0893497
    %v775 = vmul.f32 %v711, -4.0893497
    %v776 = vmul.f32 %v712, -4.0893497
    %v777 = vmul.f32 %v713, -4.0893497
    %v778 = vmul.f32 %v714, -4.0893497
    %v779 = vmul.f32 %v715, -4.0893497
    %v780 = vmul.f32 %v716, -4.0893497
    %v781 = vmul.f32 %v717, -4.0893497
    %v782 = vmul.f32 %v718, -4.0893497
    %v783 = vmul.f32 %v719, -4.0893497
    %v784 = vmul.f32 %v720, -4.0893497
    %v785 = vmul.f32 %v721, -4.0893497
    %v786 = vmul.f32 %v722, -4.0893497
    %v787 = vmul.f32 %v723, -4.0893497
    %v788 = vmul.f32 %v724, -4.0893497
    %v789 = vmul.f32 %v725, -4.0893497
    %v790 = vmul.f32 %v726, -4.0893497
    %v791 = vmul.f32 %v727, -4.0893497
    %v792 = vmul.f32 %v728, -4.0893497
    %v793 = vmul.f32 %v729, -4.0893497
    %v794 = vmul.f32 %v730, -4.0893497
    %v795 = vmul.f32 %v731, -4.0893497
    %v796 = vmul.f32 %v732, -4.0893497
    %v797 = vmul.f32 %v733, -4.0893497
    %v798 = vmul.f32 %v734, -4.0893497
    %v799 = vmul.f32 %v735, -4.0893497
    %v800 = vmul.f32 %v736, -4.0893497
    %v801 = vmul.f32 %v737, -4.0893497
    %v802 = vmul.f32 %v738, -4.0893497
    %v803 = vmul.f32 %v739, -4.0893497
    %v804 = vmul.f32 %v740, -4.0893497
    %v805 = vmul.f32 %v741, -4.0893497
    %v806 = vmul.f32 %v742, -4.0893497
    %v807 = vmul.f32 %v743, -4.0893497
    %v808 = vmul.f32 %v744, -4.0893497
    %v809 = vmul.f32 %v745, -4.0893497
    %v810 = vmul.f32 %v746, -4.0893497
    %v811 = vmul.f32 %v747, -4.0893497
    %v812 = vmul.f32 %v748, -4.0893497
    %v813 = vmul.f32 %v749, -4.0893497
    %v814 = vmul.f32 %v750, -4.0893497
    %v815 = vmul.f32 %v751, -4.0893497
    %v816 = vmul.f32 %v752, -4.0893497
    %v817 = vmul.f32 %v753, -4.0893497
    %v818 = vmul.f32 %v754, -4.0893497
    %v819 = vmul.f32 %v755, -4.0893497
    %v820 = vmul.f32 %v756, -4.0893497
    %v821 = vmul.f32 %v757, -4.0893497
    %v822 = vmul.f32 %v758, -4.0893497
    %v823 = vmul.f32 %v759, -4.0893497
    %v824 = vmul.f32 %v760, -4.0893497
    %v825 = vmul.f32 %v761, -4.0893497
    %v826 = vmul.f32 %v762, -4.0893497
    %v827 = vmul.f32 %v763, -4.0893497
    %v828 = vmul.f32 %v764, -4.0893497
    %v829 = vmul.f32 %v765, -4.0893497
    %v830 = vmul.f32 %v766, -4.0893497
    %v831 = vmul.f32 %v767, -4.0893497
    %v832 = vmul.f32 %v768, -4.0893497
    %v833 = vmul.f32 %v769, 1.442695
    %v834 = vpow.pop %v833
    %v835 = vmul.f32 %v770, 1.442695
    %v836 = vpow.pop %v835
    %v837 = vmul.f32 %v771, 1.442695
    %v838 = vpow.pop %v837
    %v839 = vmul.f32 %v772, 1.442695
    %v840 = vpow.pop %v839
    %v841 = vmul.f32 %v773, 1.442695
    %v842 = vpow.pop %v841
    %v843 = vmul.f32 %v774, 1.442695
    %v844 = vpow.pop %v843
    %v845 = vmul.f32 %v775, 1.442695
    %v846 = vpow.pop %v845
    %v847 = vmul.f32 %v776, 1.442695
    %v848 = vpow.pop %v847
    %v849 = vmul.f32 %v777, 1.442695
    %v850 = vpow.pop %v849
    %v851 = vmul.f32 %v778, 1.442695
    %v852 = vpow.pop %v851
    %v853 = vmul.f32 %v779, 1.442695
    %v854 = vpow.pop %v853
    %v855 = vmul.f32 %v780, 1.442695
    %v856 = vpow.pop %v855
    %v857 = vmul.f32 %v781, 1.442695
    %v858 = vpow.pop %v857
    %v859 = vmul.f32 %v782, 1.442695
    %v860 = vpow.pop %v859
    %v861 = vmul.f32 %v783, 1.442695
    %v862 = vpow.pop %v861
    %v863 = vmul.f32 %v784, 1.442695
    %v864 = vpow.pop %v863
    %v865 = vmul.f32 %v785, 1.442695
    %v866 = vpow.pop %v865
    %v867 = vmul.f32 %v786, 1.442695
    %v868 = vpow.pop %v867
    %v869 = vmul.f32 %v787, 1.442695
    %v870 = vpow.pop %v869
    %v871 = vmul.f32 %v788, 1.442695
    %v872 = vpow.pop %v871
    %v873 = vmul.f32 %v789, 1.442695
    %v874 = vpow.pop %v873
    %v875 = vmul.f32 %v790, 1.442695
    %v876 = vpow.pop %v875
    %v877 = vmul.f32 %v791, 1.442695
    %v878 = vpow.pop %v877
    %v879 = vmul.f32 %v792, 1.442695
    %v880 = vpow.pop %v879
    %v881 = vmul.f32 %v793, 1.442695
    %v882 = vpow.pop %v881
    %v883 = vmul.f32 %v794, 1.442695
    %v884 = vpow.pop %v883
    %v885 = vmul.f32 %v795, 1.442695
    %v886 = vpow.pop %v885
    %v887 = vmul.f32 %v796, 1.442695
    %v888 = vpow.pop %v887
    %v889 = vmul.f32 %v797, 1.442695
    %v890 = vpow.pop %v889
    %v891 = vmul.f32 %v798, 1.442695
    %v892 = vpow.pop %v891
    %v893 = vmul.f32 %v799, 1.442695
    %v894 = vpow.pop %v893
    %v895 = vmul.f32 %v800, 1.442695
    %v896 = vpow.pop %v895
    %v897 = vmul.f32 %v801, 1.442695
    %v898 = vpow.pop %v897
    %v899 = vmul.f32 %v802, 1.442695
    %v900 = vpow.pop %v899
    %v901 = vmul.f32 %v803, 1.442695
    %v902 = vpow.pop %v901
    %v903 = vmul.f32 %v804, 1.442695
    %v904 = vpow.pop %v903
    %v905 = vmul.f32 %v805, 1.442695
    %v906 = vpow.pop %v905
    %v907 = vmul.f32 %v806, 1.442695
    %v908 = vpow.pop %v907
    %v909 = vmul.f32 %v807, 1.442695
    %v910 = vpow.pop %v909
    %v911 = vmul.f32 %v808, 1.442695
    %v912 = vpow.pop %v911
    %v913 = vmul.f32 %v809, 1.442695
    %v914 = vpow.pop %v913
    %v915 = vmul.f32 %v810, 1.442695
    %v916 = vpow.pop %v915
    %v917 = vmul.f32 %v811, 1.442695
    %v918 = vpow.pop %v917
    %v919 = vmul.f32 %v812, 1.442695
    %v920 = vpow.pop %v919
    %v921 = vmul.f32 %v813, 1.442695
    %v922 = vpow.pop %v921
    %v923 = vmul.f32 %v814, 1.442695
    %v924 = vpow.pop %v923
    %v925 = vmul.f32 %v815, 1.442695
    %v926 = vpow.pop %v925
    %v927 = vmul.f32 %v816, 1.442695
    %v928 = vpow.pop %v927
    %v929 = vmul.f32 %v817, 1.442695
    %v930 = vpow.pop %v929
    %v931 = vmul.f32 %v818, 1.442695
    %v932 = vpow.pop %v931
    %v933 = vmul.f32 %v819, 1.442695
    %v934 = vpow.pop %v933
    %v935 = vmul.f32 %v820, 1.442695
    %v936 = vpow.pop %v935
    %v937 = vmul.f32 %v821, 1.442695
    %v938 = vpow.pop %v937
    %v939 = vmul.f32 %v822, 1.442695
    %v940 = vpow.pop %v939
    %v941 = vmul.f32 %v823, 1.442695
    %v942 = vpow.pop %v941
    %v943 = vmul.f32 %v824, 1.442695
    %v944 = vpow.pop %v943
    %v945 = vmul.f32 %v825, 1.442695
    %v946 = vpow.pop %v945
    %v947 = vmul.f32 %v826, 1.442695
    %v948 = vpow.pop %v947
    %v949 = vmul.f32 %v827, 1.442695
    %v950 = vpow.pop %v949
    %v951 = vmul.f32 %v828, 1.442695
    %v952 = vpow.pop %v951
    %v953 = vmul.f32 %v829, 1.442695
    %v954 = vpow.pop %v953
    %v955 = vmul.f32 %v830, 1.442695
    %v956 = vpow.pop %v955
    %v957 = vmul.f32 %v831, 1.442695
    %v958 = vpow.pop %v957
    %v959 = vmul.f32 %v832, 1.442695
    %v960 = vpow.pop %v959
    %v961 = vadd.f32 %v578, %v582
    %v962 = vadd.f32 %v961, %v586
    %v963 = vadd.f32 %v962, %v590
    %v964 = vadd.f32 %v963, %v594
    %v965 = vadd.f32 %v964, %v598
    %v966 = vadd.f32 %v965, %v602
    %v967 = vadd.f32 %v966, %v606
    %v968 = vadd.f32 %v967, %v610
    %v969 = vadd.f32 %v968, %v614
    %v970 = vadd.f32 %v969, %v618
    %v971 = vadd.f32 %v970, %v622
    %v972 = vadd.f32 %v971, %v626
    %v973 = vadd.f32 %v972, %v630
    %v974 = vadd.f32 %v973, %v634
    %v975 = vadd.f32 %v974, %v638
    %v976 = vadd.f32 %v975, %v642
    %v977 = vadd.f32 %v976, %v646
    %v978 = vadd.f32 %v977, %v650
    %v979 = vadd.f32 %v978, %v654
    %v980 = vadd.f32 %v979, %v658
    %v981 = vadd.f32 %v980, %v662
    %v982 = vadd.f32 %v981, %v666
    %v983 = vadd.f32 %v982, %v670
    %v984 = vadd.f32 %v983, %v674
    %v985 = vadd.f32 %v984, %v678
    %v986 = vadd.f32 %v985, %v682
    %v987 = vadd.f32 %v986, %v686
    %v988 = vadd.f32 %v987, %v690
    %v989 = vadd.f32 %v988, %v694
    %v990 = vadd.f32 %v989, %v698
    %v991 = vadd.f32 %v990, %v702
    %v992 = vrot.slane %v991, 4
    %v993 = vadd.f32 %v991, %v992
    %v994 = vrot.slane %v993, 2
    %v995 = vadd.f32 %v993, %v994
    %v996 = vrot.slane %v995, 1
    %v997 = vadd.f32 %v995, %v996
    %v998 = vadd.f32 %v580, %v584
    %v999 = vadd.f32 %v998, %v588
    %v1000 = vadd.f32 %v999, %v592
    %v1001 = vadd.f32 %v1000, %v596
    %v1002 = vadd.f32 %v1001, %v600
    %v1003 = vadd.f32 %v1002, %v604
    %v1004 = vadd.f32 %v1003, %v608
    %v1005 = vadd.f32 %v1004, %v612
    %v1006 = vadd.f32 %v1005, %v616
    %v1007 = vadd.f32 %v1006, %v620
    %v1008 = vadd.f32 %v1007, %v624
    %v1009 = vadd.f32 %v1008, %v628
    %v1010 = vadd.f32 %v1009, %v632
    %v1011 = vadd.f32 %v1010, %v636
    %v1012 = vadd.f32 %v1011, %v640
    %v1013 = vadd.f32 %v1012, %v644
    %v1014 = vadd.f32 %v1013, %v648
    %v1015 = vadd.f32 %v1014, %v652
    %v1016 = vadd.f32 %v1015, %v656
    %v1017 = vadd.f32 %v1016, %v660
    %v1018 = vadd.f32 %v1017, %v664
    %v1019 = vadd.f32 %v1018, %v668
    %v1020 = vadd.f32 %v1019, %v672
    %v1021 = vadd.f32 %v1020, %v676
    %v1022 = vadd.f32 %v1021, %v680
    %v1023 = vadd.f32 %v1022, %v684
    %v1024 = vadd.f32 %v1023, %v688
    %v1025 = vadd.f32 %v1024, %v692
    %v1026 = vadd.f32 %v1025, %v696
    %v1027 = vadd.f32 %v1026, %v700
    %v1028 = vadd.f32 %v1027, %v704
    %v1029 = vrot.slane %v1028, 4
    %v1030 = vadd.f32 %v1028, %v1029
    %v1031 = vrot.slane %v1030, 2
    %v1032 = vadd.f32 %v1030, %v1031
    %v1033 = vrot.slane %v1032, 1
    %v1034 = vadd.f32 %v1032, %v1033
    %v1035 = vmul.f32 %v997, 0.00390625
    %v1036 = vmul.f32 %v1034, 0.00390625
    %v1037 = vadd.f32 %v834, %v838
    %v1038 = vadd.f32 %v1037, %v842
    %v1039 = vadd.f32 %v1038, %v846
    %v1040 = vadd.f32 %v1039, %v850
    %v1041 = vadd.f32 %v1040, %v854
    %v1042 = vadd.f32 %v1041, %v858
    %v1043 = vadd.f32 %v1042, %v862
    %v1044 = vadd.f32 %v1043, %v866
    %v1045 = vadd.f32 %v1044, %v870
    %v1046 = vadd.f32 %v1045, %v874
    %v1047 = vadd.f32 %v1046, %v878
    %v1048 = vadd.f32 %v1047, %v882
    %v1049 = vadd.f32 %v1048, %v886
    %v1050 = vadd.f32 %v1049, %v890
    %v1051 = vadd.f32 %v1050, %v894
    %v1052 = vadd.f32 %v1051, %v898
    %v1053 = vadd.f32 %v1052, %v902
    %v1054 = vadd.f32 %v1053, %v906
    %v1055 = vadd.f32 %v1054, %v910
    %v1056 = vadd.f32 %v1055, %v914
    %v1057 = vadd.f32 %v1056, %v918
    %v1058 = vadd.f32 %v1057, %v922
    %v1059 = vadd.f32 %v1058, %v926
    %v1060 = vadd.f32 %v1059, %v930
    %v1061 = vadd.f32 %v1060, %v934
    %v1062 = vadd.f32 %v1061, %v938
    %v1063 = vadd.f32 %v1062, %v942
    %v1064 = vadd.f32 %v1063, %v946
    %v1065 = vadd.f32 %v1064, %v950
    %v1066 = vadd.f32 %v1065, %v954
    %v1067 = vadd.f32 %v1066, %v958
    %v1068 = vrot.slane %v1067, 4
    %v1069 = vadd.f32 %v1067, %v1068
    %v1070 = vrot.slane %v1069, 2
    %v1071 = vadd.f32 %v1069, %v1070
    %v1072 = vrot.slane %v1071, 1
    %v1073 = vadd.f32 %v1071, %v1072
    %v1074 = vadd.f32 %v836, %v840
    %v1075 = vadd.f32 %v1074, %v844
    %v1076 = vadd.f32 %v1075, %v848
    %v1077 = vadd.f32 %v1076, %v852
    %v1078 = vadd.f32 %v1077, %v856
    %v1079 = vadd.f32 %v1078, %v860
    %v1080 = vadd.f32 %v1079, %v864
    %v1081 = vadd.f32 %v1080, %v868
    %v1082 = vadd.f32 %v1081, %v872
    %v1083 = vadd.f32 %v1082, %v876
    %v1084 = vadd.f32 %v1083, %v880
    %v1085 = vadd.f32 %v1084, %v884
    %v1086 = vadd.f32 %v1085, %v888
    %v1087 = vadd.f32 %v1086, %v892
    %v1088 = vadd.f32 %v1087, %v896
    %v1089 = vadd.f32 %v1088, %v900
    %v1090 = vadd.f32 %v1089, %v904
    %v1091 = vadd.f32 %v1090, %v908
    %v1092 = vadd.f32 %v1091, %v912
    %v1093 = vadd.f32 %v1092, %v916
    %v1094 = vadd.f32 %v1093, %v920
    %v1095 = vadd.f32 %v1094, %v924
    %v1096 = vadd.f32 %v1095, %v928
    %v1097 = vadd.f32 %v1096, %v932
    %v1098 = vadd.f32 %v1097, %v936
    %v1099 = vadd.f32 %v1098, %v940
    %v1100 = vadd.f32 %v1099, %v944
    %v1101 = vadd.f32 %v1100, %v948
    %v1102 = vadd.f32 %v1101, %v952
    %v1103 = vadd.f32 %v1102, %v956
    %v1104 = vadd.f32 %v1103, %v960
    %v1105 = vrot.slane %v1104, 4
    %v1106 = vadd.f32 %v1104, %v1105
    %v1107 = vrot.slane %v1106, 2
    %v1108 = vadd.f32 %v1106, %v1107
    %v1109 = vrot.slane %v1108, 1
    %v1110 = vadd.f32 %v1108, %v1109
    %v1111 = vmul.f32 %v1073, 0.00390625
    %v1112 = vmul.f32 %v1110, 0.00390625
    %v1113 = vmul.f32 %v578, %v834
    %v1114 = vmul.f32 %v580, %v836
    %v1115 = vmul.f32 %v582, %v838
    %v1116 = vmul.f32 %v584, %v840
    %v1117 = vmul.f32 %v586, %v842
    %v1118 = vmul.f32 %v588, %v844
    %v1119 = vmul.f32 %v590, %v846
    %v1120 = vmul.f32 %v592, %v848
    %v1121 = vmul.f32 %v594, %v850
    %v1122 = vmul.f32 %v596, %v852
    %v1123 = vmul.f32 %v598, %v854
    %v1124 = vmul.f32 %v600, %v856
    %v1125 = vmul.f32 %v602, %v858
    %v1126 = vmul.f32 %v604, %v860
    %v1127 = vmul.f32 %v606, %v862
    %v1128 = vmul.f32 %v608, %v864
    %v1129 = vmul.f32 %v610, %v866
    %v1130 = vmul.f32 %v612, %v868
    %v1131 = vmul.f32 %v614, %v870
    %v1132 = vmul.f32 %v616, %v872
    %v1133 = vmul.f32 %v618, %v874
    %v1134 = vmul.f32 %v620, %v876
    %v1135 = vmul.f32 %v622, %v878
    %v1136 = vmul.f32 %v624, %v880
    %v1137 = vmul.f32 %v626, %v882
    %v1138 = vmul.f32 %v628, %v884
    %v1139 = vmul.f32 %v630, %v886
    %v1140 = vmul.f32 %v632, %v888
    %v1141 = vmul.f32 %v634, %v890
    %v1142 = vmul.f32 %v636, %v892
    %v1143 = vmul.f32 %v638, %v894
    %v1144 = vmul.f32 %v640, %v896
    %v1145 = vmul.f32 %v642, %v898
    %v1146 = vmul.f32 %v644, %v900
    %v1147 = vmul.f32 %v646, %v902
    %v1148 = vmul.f32 %v648, %v904
    %v1149 = vmul.f32 %v650, %v906
    %v1150 = vmul.f32 %v652, %v908
    %v1151 = vmul.f32 %v654, %v910
    %v1152 = vmul.f32 %v656, %v912
    %v1153 = vmul.f32 %v658, %v914
    %v1154 = vmul.f32 %v660, %v916
    %v1155 = vmul.f32 %v662, %v918
    %v1156 = vmul.f32 %v664, %v920
    %v1157 = vmul.f32 %v666, %v922
    %v1158 = vmul.f32 %v668, %v924
    %v1159 = vmul.f32 %v670, %v926
    %v1160 = vmul.f32 %v672, %v928
    %v1161 = vmul.f32 %v674, %v930
    %v1162 = vmul.f32 %v676, %v932
    %v1163 = vmul.f32 %v678, %v934
    %v1164 = vmul.f32 %v680, %v936
    %v1165 = vmul.f32 %v682, %v938
    %v1166 = vmul.f32 %v684, %v940
    %v1167 = vmul.f32 %v686, %v942
    %v1168 = vmul.f32 %v688, %v944
    %v1169 = vmul.f32 %v690, %v946
    %v1170 = vmul.f32 %v692, %v948
    %v1171 = vmul.f32 %v694, %v950
    %v1172 = vmul.f32 %v696, %v952
    %v1173 = vmul.f32 %v698, %v954
    %v1174 = vmul.f32 %v700, %v956
    %v1175 = vmul.f32 %v702, %v958
    %v1176 = vmul.f32 %v704, %v960
    %v1177 = vadd.f32 %v1113, %v1115
    %v1178 = vadd.f32 %v1177, %v1117
    %v1179 = vadd.f32 %v1178, %v1119
    %v1180 = vadd.f32 %v1179, %v1121
    %v1181 = vadd.f32 %v1180, %v1123
    %v1182 = vadd.f32 %v1181, %v1125
    %v1183 = vadd.f32 %v1182, %v1127
    %v1184 = vadd.f32 %v1183, %v1129
    %v1185 = vadd.f32 %v1184, %v1131
    %v1186 = vadd.f32 %v1185, %v1133
    %v1187 = vadd.f32 %v1186, %v1135
    %v1188 = vadd.f32 %v1187, %v1137
    %v1189 = vadd.f32 %v1188, %v1139
    %v1190 = vadd.f32 %v1189, %v1141
    %v1191 = vadd.f32 %v1190, %v1143
    %v1192 = vadd.f32 %v1191, %v1145
    %v1193 = vadd.f32 %v1192, %v1147
    %v1194 = vadd.f32 %v1193, %v1149
    %v1195 = vadd.f32 %v1194, %v1151
    %v1196 = vadd.f32 %v1195, %v1153
    %v1197 = vadd.f32 %v1196, %v1155
    %v1198 = vadd.f32 %v1197, %v1157
    %v1199 = vadd.f32 %v1198, %v1159
    %v1200 = vadd.f32 %v1199, %v1161
    %v1201 = vadd.f32 %v1200, %v1163
    %v1202 = vadd.f32 %v1201, %v1165
    %v1203 = vadd.f32 %v1202, %v1167
    %v1204 = vadd.f32 %v1203, %v1169
    %v1205 = vadd.f32 %v1204, %v1171
    %v1206 = vadd.f32 %v1205, %v1173
    %v1207 = vadd.f32 %v1206, %v1175
    %v1208 = vrot.slane %v1207, 4
    %v1209 = vadd.f32 %v1207, %v1208
    %v1210 = vrot.slane %v1209, 2
    %v1211 = vadd.f32 %v1209, %v1210
    %v1212 = vrot.slane %v1211, 1
    %v1213 = vadd.f32 %v1211, %v1212
    %v1214 = vadd.f32 %v1114, %v1116
    %v1215 = vadd.f32 %v1214, %v1118
    %v1216 = vadd.f32 %v1215, %v1120
    %v1217 = vadd.f32 %v1216, %v1122
    %v1218 = vadd.f32 %v1217, %v1124
    %v1219 = vadd.f32 %v1218, %v1126
    %v1220 = vadd.f32 %v1219, %v1128
    %v1221 = vadd.f32 %v1220, %v1130
    %v1222 = vadd.f32 %v1221, %v1132
    %v1223 = vadd.f32 %v1222, %v1134
    %v1224 = vadd.f32 %v1223, %v1136
    %v1225 = vadd.f32 %v1224, %v1138
    %v1226 = vadd.f32 %v1225, %v1140
    %v1227 = vadd.f32 %v1226, %v1142
    %v1228 = vadd.f32 %v1227, %v1144
    %v1229 = vadd.f32 %v1228, %v1146
    %v1230 = vadd.f32 %v1229, %v1148
    %v1231 = vadd.f32 %v1230, %v1150
    %v1232 = vadd.f32 %v1231, %v1152
    %v1233 = vadd.f32 %v1232, %v1154
    %v1234 = vadd.f32 %v1233, %v1156
    %v1235 = vadd.f32 %v1234, %v1158
    %v1236 = vadd.f32 %v1235, %v1160
    %v1237 = vadd.f32 %v1236, %v1162
    %v1238 = vadd.f32 %v1237, %v1164
    %v1239 = vadd.f32 %v1238, %v1166
    %v1240 = vadd.f32 %v1239, %v1168
    %v1241 = vadd.f32 %v1240, %v1170
    %v1242 = vadd.f32 %v1241, %v1172
    %v1243 = vadd.f32 %v1242, %v1174
    %v1244 = vadd.f32 %v1243, %v1176
    %v1245 = vrot.slane %v1244, 4
    %v1246 = vadd.f32 %v1244, %v1245
    %v1247 = vrot.slane %v1246, 2
    %v1248 = vadd.f32 %v1246, %v1247
    %v1249 = vrot.slane %v1248, 1
    %v1250 = vadd.f32 %v1248, %v1249
    %v1251 = vmul.f32 %v1213, 0.00390625
    %v1252 = vmul.f32 %v1250, 0.00390625
    %v1253 = vadd.f32 %v1251, 1e-12
    %v1254 = vadd.f32 %v1252, 1e-12
    %v1255 = vlog2.pop %v1253
    %v1256 = vmul.f32 %v1255, 0.6931472
    %v1257 = vlog2.pop %v1254
    %v1258 = vmul.f32 %v1257, 0.6931472
    %v1259 = vadd.f32 %v1035, 1e-12
    %v1260 = vadd.f32 %v1036, 1e-12
    %v1261 = vlog2.pop %v1259
    %v1262 = vmul.f32 %v1261, 0.6931472
    %v1263 = vlog2.pop %v1260
    %v1264 = vmul.f32 %v1263, 0.6931472
    %v1265 = vsub.f32 %v1256, %v1262
    %v1266 = vsub.f32 %v1258, %v1264
    %v1267 = vadd.f32 %v1111, 1e-12
    %v1268 = vadd.f32 %v1112, 1e-12
    %v1269 = vlog2.pop %v1267
    %v1270 = vmul.f32 %v1269, 0.6931472
    %v1271 = vlog2.pop %v1268
    %v1272 = vmul.f32 %v1271, 0.6931472
    %v1273 = vsub.f32 %v1265, %v1270
    %v1274 = vsub.f32 %v1266, %v1272
    %v1275 = vsel %vm31, %v1273, 0.0
    %v1276 = vsel %vm31, %v1274, 0.0
    %v1277 = vadd.f32 %v1275, %v1276
    %1278 = vadd.xlane.f32.xlu0 %v1277
    %v1279 = vpop.xlane.xlu0 %1278
    %v1280 = vrot.slane %v1279, 4
    %v1281 = vadd.f32 %v1279, %v1280
    %v1282 = vrot.slane %v1281, 2
    %v1283 = vadd.f32 %v1281, %v1282
    %v1284 = vrot.slane %v1283, 1
    %v1285 = vadd.f32 %v1283, %v1284
    %s1286 = vtos %v1285
    %v1287 = vstv %s1286
    %v1288 = vmul.f32 %v1287, 0.00390625
    %v1289 = vand.u32 2147483647, %v1288
    %v1290 = vmul.f32 %v1289, 0.5
    %v1291 = vadd.f32 %v45, %v1290
    %vm1292 = vcmask 0
    %1293 = vst.msk [vmem:[#allocation2] sm:$0x1] %vm1292, %v1291
    %1294 = vst.msk [vmem:[#allocation4] sm:$0x1] %vm1292, %v45
    %1295 = vst.msk [vmem:[#allocation6] sm:$0x1] %vm1292, %v1288
    // Predicated region
    $region10: #{_mi_loss_batched.1} parent=1 // pred_check
      _
    $region11: #{_mi_loss_batched.1} parent=1 // pred_check_branch
      %1297 = sbr.rel (0) target = $region13
    $region12: #{_mi_loss_batched.1} parent=1 // pred_region
      %s1299 = ssub.s32 16, 16
      %1300 = vsyncadd [#allocation3], %s1299
      %s1302 = sshll.u32 [#allocation2], 4
      %s1303 = int_to_ptr.vmem [resolvable:$true] %s1302
      %1305 = dma.vmem_to_hbm [thread:$0]  %s1303, 16, %s2, [#allocation3]
    $region13: #{_mi_loss_batched.1} parent=1 // pred_fallthru
      _
    // Predicated region
    $region14: #{_mi_loss_batched.1} parent=1 // pred_check
      _
    $region15: #{_mi_loss_batched.1} parent=1 // pred_check_branch
      %1307 = sbr.rel (0) target = $region17
    $region16: #{_mi_loss_batched.1} parent=1 // pred_region
      %s1309 = ssub.s32 16, 16
      %1310 = vsyncadd [#allocation5], %s1309
      %s1312 = sshll.u32 [#allocation4], 4
      %s1313 = int_to_ptr.vmem [resolvable:$true] %s1312
      %1315 = dma.vmem_to_hbm [thread:$0]  %s1313, 16, %s3, [#allocation5]
    $region17: #{_mi_loss_batched.1} parent=1 // pred_fallthru
      _
    // Predicated region
    $region18: #{_mi_loss_batched.1} parent=1 // pred_check
      _
    $region19: #{_mi_loss_batched.1} parent=1 // pred_check_branch
      %1317 = sbr.rel (0) target = $region21
    $region20: #{_mi_loss_batched.1} parent=1 // pred_region
      %s1319 = ssub.s32 16, 16
      %1320 = vsyncadd [#allocation5], %s1319
      %s1322 = sshll.u32 [#allocation6], 4
      %s1323 = int_to_ptr.vmem [resolvable:$true] %s1322
      %1325 = dma.vmem_to_hbm [thread:$0]  %s1323, 16, %s4, [#allocation5]
    $region21: #{_mi_loss_batched.1} parent=1 // pred_fallthru
      _
    // Predicated region
    $region22: #{_mi_loss_batched.1} parent=1 // pred_check
      _
    $region23: #{_mi_loss_batched.1} parent=1 // pred_check_branch
      %1327 = sbr.rel (0) target = $region25
    $region24: #{_mi_loss_batched.1} parent=1 // pred_region
      %1328 = dma.done [#allocation3], 16
    $region25: #{_mi_loss_batched.1} parent=1 // pred_fallthru
      _
    // Predicated region
    $region26: #{_mi_loss_batched.1} parent=1 // pred_check
      _
    $region27: #{_mi_loss_batched.1} parent=1 // pred_check_branch
      %1330 = sbr.rel (0) target = $region29
    $region28: #{_mi_loss_batched.1} parent=1 // pred_region
      %1331 = dma.done [#allocation5], 16
    $region29: #{_mi_loss_batched.1} parent=1 // pred_fallthru
      _
    // Predicated region
    $region30: #{_mi_loss_batched.1} parent=1 // pred_check
      _
    $region31: #{_mi_loss_batched.1} parent=1 // pred_check_branch
      %1333 = sbr.rel (0) target = $region33
    $region32: #{_mi_loss_batched.1} parent=1 // pred_region
      %1334 = dma.done [#allocation5], 16
    $region33: #{_mi_loss_batched.1} parent=1 // pred_fallthru
      _
    %1335 = vsyncpa [#allocation3], 1
    %1336 = vsyncpa [#allocation5], 1

</llo_original>
